<compile_context>
chip_gen: v7x
topology: tpu7x:2x2x1
jax: 0.10.0
libtpu: 0.0.40
codegen_flags: <defaults>
</compile_context>

<pallas_src>
import math
import functools

import jax
import jax.numpy as jnp
from jax import lax
from jax.experimental import pallas as pl
from jax.experimental.pallas import tpu as pltpu

_VMEM_LIMIT = 32 * 1024 * 1024  # safe on v5e / v6e / v7x


def _tile(dim: int, target: int) -> int:
    """Largest legal tile: `target` if it divides dim evenly, else full extent."""
    if dim <= target or dim % target != 0:
        return dim
    return target


# ----------------------------------------------------------------------------
# Tiled matmul kernel:  y = x @ w   (x: (M,K) bf16, w: (K,N) bf16, acc f32)
# ----------------------------------------------------------------------------
def _matmul_kernel(x_ref, w_ref, o_ref, acc_ref):
    @pl.when(pl.program_id(2) == 0)
    def _():
        acc_ref[...] = jnp.zeros_like(acc_ref)

    acc_ref[...] += jnp.dot(x_ref[...], w_ref[...],
                            preferred_element_type=jnp.float32)

    @pl.when(pl.program_id(2) == pl.num_programs(2) - 1)
    def _():
        o_ref[...] = acc_ref[...].astype(o_ref.dtype)


def matmul(x, w, *, out_dtype=jnp.float32, tm=512, tn=512, tk=512):
    """x: (M, K), w: (K, N) -> (M, N)."""
    M, K = x.shape
    _, N = w.shape
    tm, tn, tk = _tile(M, tm), _tile(N, tn), _tile(K, tk)
    return pl.pallas_call(
        _matmul_kernel,
        out_shape=jax.ShapeDtypeStruct((M, N), out_dtype),
        grid=(M // tm, N // tn, K // tk),
        in_specs=[
            pl.BlockSpec((tm, tk), lambda i, j, kk: (i, kk)),
            pl.BlockSpec((tk, tn), lambda i, j, kk: (kk, j)),
        ],
        out_specs=pl.BlockSpec((tm, tn), lambda i, j, kk: (i, j)),
        scratch_shapes=[pltpu.VMEM((tm, tn), jnp.float32)],
        compiler_params=pltpu.CompilerParams(
            dimension_semantics=("parallel", "parallel", "arbitrary"),
            vmem_limit_bytes=_VMEM_LIMIT),
    )(x, w)


# ----------------------------------------------------------------------------
# Fused Q/K/V projection: one pallas_call, three matmuls sharing the pipeline
# ----------------------------------------------------------------------------
def _qkv_proj_kernel(q_ref, k_ref, v_ref, wq_ref, wk_ref, wv_ref,
                     oq_ref, ok_ref, ov_ref, accq, acck, accv):
    kk = pl.program_id(2)

    @pl.when(kk == 0)
    def _():
        accq[...] = jnp.zeros_like(accq)
        acck[...] = jnp.zeros_like(acck)
        accv[...] = jnp.zeros_like(accv)

    accq[...] += jnp.dot(q_ref[...], wq_ref[...], preferred_element_type=jnp.float32)
    acck[...] += jnp.dot(k_ref[...], wk_ref[...], preferred_element_type=jnp.float32)
    accv[...] += jnp.dot(v_ref[...], wv_ref[...], preferred_element_type=jnp.float32)

    @pl.when(kk == pl.num_programs(2) - 1)
    def _():
        oq_ref[...] = accq[...].astype(oq_ref.dtype)
        ok_ref[...] = acck[...].astype(ok_ref.dtype)
        ov_ref[...] = accv[...].astype(ov_ref.dtype)


def qkv_projection(q, k, v, wq_t, wk_t, wv_t, *, out_dtype=jnp.bfloat16,
                   tm=512, tn=512, tk=512):
    """q/k/v: (M, Din) bf16, w*_t: (Din, Dout) bf16 -> three (M, Dout)."""
    M, K = q.shape
    N = wq_t.shape[1]
    tm, tn, tk = _tile(M, tm), _tile(N, tn), _tile(K, tk)
    x_spec = pl.BlockSpec((tm, tk), lambda i, j, kk: (i, kk))
    w_spec = pl.BlockSpec((tk, tn), lambda i, j, kk: (kk, j))
    o_spec = pl.BlockSpec((tm, tn), lambda i, j, kk: (i, j))
    out_sd = jax.ShapeDtypeStruct((M, N), out_dtype)
    return pl.pallas_call(
        _qkv_proj_kernel,
        out_shape=(out_sd, out_sd, out_sd),
        grid=(M // tm, N // tn, K // tk),
        in_specs=[x_spec, x_spec, x_spec, w_spec, w_spec, w_spec],
        out_specs=(o_spec, o_spec, o_spec),
        scratch_shapes=[pltpu.VMEM((tm, tn), jnp.float32)] * 3,
        compiler_params=pltpu.CompilerParams(
            dimension_semantics=("parallel", "parallel", "arbitrary"),
            vmem_limit_bytes=_VMEM_LIMIT),
    )(q, k, v, wq_t, wk_t, wv_t)


# ----------------------------------------------------------------------------
# Flash-style attention over (batch*head), KV tiled, no S x S HBM write
# ----------------------------------------------------------------------------
def _flash_attn_kernel(q_ref, k_ref, v_ref, mask_ref, o_ref,
                       m_sc, l_sc, acc_sc, *, scale):
    ki = pl.program_id(2)

    @pl.when(ki == 0)
    def _():
        m_sc[...] = jnp.full_like(m_sc, -jnp.inf)
        l_sc[...] = jnp.zeros_like(l_sc)
        acc_sc[...] = jnp.zeros_like(acc_sc)

    # fold 1/sqrt(d_k) into the (tq, d_k) q tile instead of the (tq, tkv) scores
    q = (q_ref[0].astype(jnp.float32) * scale).astype(jnp.bfloat16)   # (tq, dk)
    k = k_ref[0]                                                       # (tkv, dk) bf16
    v = v_ref[0]                                                       # (tkv, dk) bf16
    msk = mask_ref[0, 0]                                               # (tq, tkv) int32

    s = lax.dot_general(q, k, dimension_numbers=(((1,), (1,)), ((), ())),
                        preferred_element_type=jnp.float32)            # (tq, tkv) f32
    s = jnp.where(msk == 0, jnp.float32(-1.0e9), s)

    m_prev = m_sc[...]
    m_new = jnp.maximum(m_prev, jnp.max(s, axis=-1, keepdims=True))
    alpha = jnp.exp(m_prev - m_new)
    p = jnp.exp(s - m_new)
    l_sc[...] = alpha * l_sc[...] + jnp.sum(p, axis=-1, keepdims=True)
    acc_sc[...] = alpha * acc_sc[...] + jnp.dot(p.astype(jnp.bfloat16), v,
                                                preferred_element_type=jnp.float32)
    m_sc[...] = m_new

    @pl.when(ki == pl.num_programs(2) - 1)
    def _():
        o_ref[0] = (acc_sc[...] *
                    pl.reciprocal(l_sc[...], approx=True)).astype(o_ref.dtype)


def flash_attention(qh, kh, vh, mask, head, *, out_dtype=jnp.bfloat16):
    """qh: (B*H, Sq, dk), kh/vh: (B*H, Skv, dk) bf16, mask: (B,1,Sq,Skv) int32."""
    BH, Sq, dk = qh.shape
    _, Skv, _ = kh.shape
    scale = 1.0 / math.sqrt(dk)
    tq = _tile(Sq, 256)
    tkv = _tile(Skv, 512)
    kern = functools.partial(_flash_attn_kernel, scale=scale)
    return pl.pallas_call(
        kern,
        out_shape=jax.ShapeDtypeStruct((BH, Sq, dk), out_dtype),
        grid=(BH, Sq // tq, Skv // tkv),
        in_specs=[
            pl.BlockSpec((1, tq, dk), lambda bh, qi, ki: (bh, qi, 0)),
            pl.BlockSpec((1, tkv, dk), lambda bh, qi, ki: (bh, ki, 0)),
            pl.BlockSpec((1, tkv, dk), lambda bh, qi, ki: (bh, ki, 0)),
            # all H heads of a batch reuse the same mask tile (no broadcast copy)
            pl.BlockSpec((1, 1, tq, tkv), lambda bh, qi, ki: (bh // head, 0, qi, ki)),
        ],
        out_specs=pl.BlockSpec((1, tq, dk), lambda bh, qi, ki: (bh, qi, 0)),
        scratch_shapes=[
            pltpu.VMEM((tq, 1), jnp.float32),   # running max
            pltpu.VMEM((tq, 1), jnp.float32),   # running denom
            pltpu.VMEM((tq, dk), jnp.float32),  # context accumulator
        ],
        compiler_params=pltpu.CompilerParams(
            dimension_semantics=("parallel", "parallel", "arbitrary"),
            vmem_limit_bytes=_VMEM_LIMIT),
    )(qh, kh, vh, mask)


# ----------------------------------------------------------------------------
# Optional path: explicit attention probabilities (module's attention_scores)
# ----------------------------------------------------------------------------
def _attn_probs_kernel(q_ref, k_ref, mask_ref, p_ref, *, scale):
    q = (q_ref[0].astype(jnp.float32) * scale).astype(jnp.bfloat16)   # (tq, dk)
    k = k_ref[0]                                                       # (Skv, dk)
    s = lax.dot_general(q, k, dimension_numbers=(((1,), (1,)), ((), ())),
                        preferred_element_type=jnp.float32)            # (tq, Skv)
    s = jnp.where(mask_ref[0, 0] == 0, jnp.float32(-1.0e9), s)
    mx = jnp.max(s, axis=-1, keepdims=True)
    e = jnp.exp(s - mx)
    p_ref[0] = (e / jnp.sum(e, axis=-1, keepdims=True)).astype(p_ref.dtype)


def attention_probs(qh, kh, mask, head):
    BH, Sq, dk = qh.shape
    _, Skv, _ = kh.shape
    scale = 1.0 / math.sqrt(dk)
    tq = _tile(Sq, 256)
    kern = functools.partial(_attn_probs_kernel, scale=scale)
    return pl.pallas_call(
        kern,
        out_shape=jax.ShapeDtypeStruct((BH, Sq, Skv), jnp.float32),
        grid=(BH, Sq // tq),
        in_specs=[
            pl.BlockSpec((1, tq, dk), lambda bh, qi: (bh, qi, 0)),
            pl.BlockSpec((1, Skv, dk), lambda bh, qi: (bh, 0, 0)),
            pl.BlockSpec((1, 1, tq, Skv), lambda bh, qi: (bh // head, 0, qi, 0)),
        ],
        out_specs=pl.BlockSpec((1, tq, Skv), lambda bh, qi: (bh, qi, 0)),
        compiler_params=pltpu.CompilerParams(
            dimension_semantics=("parallel", "parallel"),
            vmem_limit_bytes=_VMEM_LIMIT),
    )(qh, kh, mask)


# ----------------------------------------------------------------------------
# Module wrapper (reshape / head split-merge glue stays in plain JAX)
# ----------------------------------------------------------------------------
def multi_head_attention_block(q, k, v, mask, params, head,
                               return_attention_scores=False):
    B, Sq, D = q.shape
    _, Skv, _ = k.shape
    d_k = D // head

    # Weight prep (one-time in real use): (Dout,Din) -> (Din,Dout), bf16 for MXU.
    wq_t = params["w_q"].T.astype(jnp.bfloat16)
    wk_t = params["w_k"].T.astype(jnp.bfloat16)
    wv_t = params["w_v"].T.astype(jnp.bfloat16)
    wo_t = params["w_o"].T.astype(jnp.bfloat16)

    if mask is None:
        # TODO(synk): dedicated maskless kernel path would avoid this all-ones mask.
        mask = jnp.ones((B, 1, Sq, Skv), dtype=jnp.int32)
    mask = mask.astype(jnp.int32)

    # Projections (bf16 MXU inputs, f32 accumulation).
    if q.shape == k.shape == v.shape:
        query, key, value = qkv_projection(
            q.reshape(B * Sq, D).astype(jnp.bfloat16),
            k.reshape(B * Skv, D).astype(jnp.bfloat16),
            v.reshape(B * Skv, D).astype(jnp.bfloat16),
            wq_t, wk_t, wv_t)
    else:  # cross-attention with differing sequence lengths
        query = matmul(q.reshape(B * Sq, D).astype(jnp.bfloat16), wq_t,
                       out_dtype=jnp.bfloat16)
        key = matmul(k.reshape(B * Skv, D).astype(jnp.bfloat16), wk_t,
                     out_dtype=jnp.bfloat16)
        value = matmul(v.reshape(B * Skv, D).astype(jnp.bfloat16), wv_t,
                       out_dtype=jnp.bfloat16)

    # split heads: (B, S, D) -> (B*H, S, d_k)
    def split_heads(x, s):
        return (x.reshape(B, s, head, d_k)
                 .transpose(0, 2, 1, 3)
                 .reshape(B * head, s, d_k))

    qh = split_heads(query.reshape(B, Sq, D), Sq)
    kh = split_heads(key.reshape(B, Skv, D), Skv)
    vh = split_heads(value.reshape(B, Skv, D), Skv)

    # Flash attention: only the (B*H, Sq, d_k) context ever touches HBM.
    ctx = flash_attention(qh, kh, vh, mask, head)

    # merge heads: (B*H, Sq, d_k) -> (B, Sq, D)
    x = (ctx.reshape(B, head, Sq, d_k)
            .transpose(0, 2, 1, 3)
            .reshape(B * Sq, D))

    out = matmul(x, wo_t, out_dtype=jnp.float32).reshape(B, Sq, D)

    if return_attention_scores:
        attn = attention_probs(qh, kh, mask, head).reshape(B, head, Sq, Skv)
        return out, attn
    return out


# ----------------------------------------------------------------------------
# Pure-JAX f32 reference (correctness check)
# ----------------------------------------------------------------------------
def reference_mha(q, k, v, mask, params, head):
    B, S, D = q.shape
    d_k = D // head
    query = q @ params["w_q"].T
    key = k @ params["w_k"].T
    value = v @ params["w_v"].T

    def split(x):
        return x.reshape(B, -1, head, d_k).transpose(0, 2, 1, 3)

    qh, kh, vh = split(query), split(key), split(value)
    scores = (qh @ kh.transpose(0, 1, 3, 2)) / math.sqrt(d_k)
    scores = jnp.where(mask == 0, -1.0e9, scores)
    probs = jax.nn.softmax(scores, axis=-1)
    ctx = probs @ vh
    x = ctx.transpose(0, 2, 1, 3).reshape(B, -1, D)
    return x @ params["w_o"].T, probs


if __name__ == "__main__":
    B, S, D, H = 2, 8, 32, 4  # batch, seq, d_model, heads (d_k = 8)

    key0 = jax.random.PRNGKey(0)
    kq, kk, kv, kwq, kwk, kwv, kwo = jax.random.split(key0, 7)

    q = jax.random.normal(kq, (B, S, D), dtype=jnp.float32)
    k = jax.random.normal(kk, (B, S, D), dtype=jnp.float32)
    v = jax.random.normal(kv, (B, S, D), dtype=jnp.float32)

    scale = 1.0 / math.sqrt(D)
    params = {
        "w_q": jax.random.uniform(kwq, (D, D), jnp.float32, -scale, scale),
        "w_k": jax.random.uniform(kwk, (D, D), jnp.float32, -scale, scale),
        "w_v": jax.random.uniform(kwv, (D, D), jnp.float32, -scale, scale),
        "w_o": jax.random.uniform(kwo, (D, D), jnp.float32, -scale, scale),
    }

    # causal mask, shape (B, 1, S, S), 0 = masked out
    causal = jnp.tril(jnp.ones((S, S), dtype=jnp.int32))
    mask = jnp.broadcast_to(causal[None, None, :, :], (B, 1, S, S))

    # default (flash, no probs) path
    out = multi_head_attention_block(q, k, v, mask, params, H)
    out = jax.block_until_ready(out)

    # optional attention-probs path (matches module's attention_scores attribute)
    out2, attn = multi_head_attention_block(q, k, v, mask, params, H,
                                            return_attention_scores=True)
    out2 = jax.block_until_ready(out2)
    attn = jax.block_until_ready(attn)

    ref_out, ref_attn = reference_mha(q, k, v, mask, params, H)

    # bf16 MXU inputs with f32 accumulation -> compare against the f32 reference
    # with a bf16-appropriate tolerance.
    assert jnp.allclose(out, ref_out, atol=2e-2, rtol=2e-2), "output mismatch"
    assert jnp.allclose(out2, ref_out, atol=2e-2, rtol=2e-2), "output mismatch (probs path)"
    assert jnp.allclose(attn, ref_attn, atol=2e-2, rtol=2e-2), "attention-score mismatch"

    print("KERNEL_OK")
</pallas_src>

<mosaic_0001>
module attributes {stable_mosaic.version = 11 : i64} {
  func.func @_qkv_proj_kernel(%arg0: i32, %arg1: i32, %arg2: i32, %arg3: memref<16x32xbf16, #tpu.memory_space<vmem>>, %arg4: memref<16x32xbf16, #tpu.memory_space<vmem>>, %arg5: memref<16x32xbf16, #tpu.memory_space<vmem>>, %arg6: memref<32x32xbf16, #tpu.memory_space<vmem>>, %arg7: memref<32x32xbf16, #tpu.memory_space<vmem>>, %arg8: memref<32x32xbf16, #tpu.memory_space<vmem>>, %arg9: memref<16x32xbf16, #tpu.memory_space<vmem>>, %arg10: memref<16x32xbf16, #tpu.memory_space<vmem>>, %arg11: memref<16x32xbf16, #tpu.memory_space<vmem>>, %arg12: memref<16x32xf32, #tpu.memory_space<vmem>>, %arg13: memref<16x32xf32, #tpu.memory_space<vmem>>, %arg14: memref<16x32xf32, #tpu.memory_space<vmem>>) attributes {dimension_semantics = [#tpu.dimension_semantics<parallel>, #tpu.dimension_semantics<parallel>, #tpu.dimension_semantics<arbitrary>], iteration_bounds = array<i64: 1, 1, 1>, scalar_prefetch = 0 : i64, scratch_operands = 3 : i64, tpu.core_type = #tpu.core_type<tc>, window_params = [{transform_indices = @transform_0, window_bounds = array<i64: 16, 32>}, {transform_indices = @transform_1, window_bounds = array<i64: 16, 32>}, {transform_indices = @transform_2, window_bounds = array<i64: 16, 32>}, {transform_indices = @transform_3, window_bounds = array<i64: 32, 32>}, {transform_indices = @transform_4, window_bounds = array<i64: 32, 32>}, {transform_indices = @transform_5, window_bounds = array<i64: 32, 32>}, {transform_indices = @transform_6, window_bounds = array<i64: 16, 32>}, {transform_indices = @transform_7, window_bounds = array<i64: 16, 32>}, {transform_indices = @transform_8, window_bounds = array<i64: 16, 32>}]} {
    %c0_i32 = arith.constant 0 : i32
    %0 = arith.cmpi eq, %arg2, %c0_i32 : i32
    %1 = arith.extui %0 : i1 to i32
    %c0_i32_0 = arith.constant 0 : i32
    %2 = arith.cmpi ne, %1, %c0_i32_0 : i32
    scf.if %2 {
      %cst_28 = arith.constant 0.000000e+00 : f32
      %24 = vector.broadcast %cst_28 : f32 to vector<16x32xf32>
      %c0_29 = arith.constant 0 : index
      %c0_30 = arith.constant 0 : index
      %25 = vector.load %arg12[%c0_29, %c0_30] : memref<16x32xf32, #tpu.memory_space<vmem>>, vector<16x32xf32>
      tpu.vector_store %arg12[%c0_29, %c0_30], %24 {strides = array<i32>} : memref<16x32xf32, #tpu.memory_space<vmem>>, vector<16x32xf32>,
      %cst_31 = arith.constant 0.000000e+00 : f32
      %26 = vector.broadcast %cst_31 : f32 to vector<16x32xf32>
      %c0_32 = arith.constant 0 : index
      %c0_33 = arith.constant 0 : index
      %27 = vector.load %arg13[%c0_32, %c0_33] : memref<16x32xf32, #tpu.memory_space<vmem>>, vector<16x32xf32>
      tpu.vector_store %arg13[%c0_32, %c0_33], %26 {strides = array<i32>} : memref<16x32xf32, #tpu.memory_space<vmem>>, vector<16x32xf32>,
      %cst_34 = arith.constant 0.000000e+00 : f32
      %28 = vector.broadcast %cst_34 : f32 to vector<16x32xf32>
      %c0_35 = arith.constant 0 : index
      %c0_36 = arith.constant 0 : index
      %29 = vector.load %arg14[%c0_35, %c0_36] : memref<16x32xf32, #tpu.memory_space<vmem>>, vector<16x32xf32>
      tpu.vector_store %arg14[%c0_35, %c0_36], %28 {strides = array<i32>} : memref<16x32xf32, #tpu.memory_space<vmem>>, vector<16x32xf32>,
    } else {
    }
    %c0 = arith.constant 0 : index
    %c0_1 = arith.constant 0 : index
    %3 = vector.load %arg12[%c0, %c0_1] : memref<16x32xf32, #tpu.memory_space<vmem>>, vector<16x32xf32>
    %c0_2 = arith.constant 0 : index
    %c0_3 = arith.constant 0 : index
    %4 = vector.load %arg3[%c0_2, %c0_3] : memref<16x32xbf16, #tpu.memory_space<vmem>>, vector<16x32xbf16>
    %c0_4 = arith.constant 0 : index
    %c0_5 = arith.constant 0 : index
    %5 = vector.load %arg6[%c0_4, %c0_5] : memref<32x32xbf16, #tpu.memory_space<vmem>>, vector<32x32xbf16>
    %cst = arith.constant dense<0.000000e+00> : vector<16x32xf32>
    %6 = tpu.matmul %4, %5, %cst {dimension_numbers = #tpu.dot_dimension_numbers<[1], [0], [0], [1], [0, 0, 1, 1], [], []>} : vector<16x32xbf16>, vector<32x32xbf16>, vector<16x32xf32> -> vector<16x32xf32>
    %7 = arith.addf %3, %6 : vector<16x32xf32>
    %c0_6 = arith.constant 0 : index
    %c0_7 = arith.constant 0 : index
    %8 = vector.load %arg12[%c0_6, %c0_7] : memref<16x32xf32, #tpu.memory_space<vmem>>, vector<16x32xf32>
    tpu.vector_store %arg12[%c0_6, %c0_7], %7 {strides = array<i32>} : memref<16x32xf32, #tpu.memory_space<vmem>>, vector<16x32xf32>,
    %c0_8 = arith.constant 0 : index
    %c0_9 = arith.constant 0 : index
    %9 = vector.load %arg13[%c0_8, %c0_9] : memref<16x32xf32, #tpu.memory_space<vmem>>, vector<16x32xf32>
    %c0_10 = arith.constant 0 : index
    %c0_11 = arith.constant 0 : index
    %10 = vector.load %arg4[%c0_10, %c0_11] : memref<16x32xbf16, #tpu.memory_space<vmem>>, vector<16x32xbf16>
    %c0_12 = arith.constant 0 : index
    %c0_13 = arith.constant 0 : index
    %11 = vector.load %arg7[%c0_12, %c0_13] : memref<32x32xbf16, #tpu.memory_space<vmem>>, vector<32x32xbf16>
    %cst_14 = arith.constant dense<0.000000e+00> : vector<16x32xf32>
    %12 = tpu.matmul %10, %11, %cst_14 {dimension_numbers = #tpu.dot_dimension_numbers<[1], [0], [0], [1], [0, 0, 1, 1], [], []>} : vector<16x32xbf16>, vector<32x32xbf16>, vector<16x32xf32> -> vector<16x32xf32>
    %13 = arith.addf %9, %12 : vector<16x32xf32>
    %c0_15 = arith.constant 0 : index
    %c0_16 = arith.constant 0 : index
    %14 = vector.load %arg13[%c0_15, %c0_16] : memref<16x32xf32, #tpu.memory_space<vmem>>, vector<16x32xf32>
    tpu.vector_store %arg13[%c0_15, %c0_16], %13 {strides = array<i32>} : memref<16x32xf32, #tpu.memory_space<vmem>>, vector<16x32xf32>,
    %c0_17 = arith.constant 0 : index
    %c0_18 = arith.constant 0 : index
    %15 = vector.load %arg14[%c0_17, %c0_18] : memref<16x32xf32, #tpu.memory_space<vmem>>, vector<16x32xf32>
    %c0_19 = arith.constant 0 : index
    %c0_20 = arith.constant 0 : index
    %16 = vector.load %arg5[%c0_19, %c0_20] : memref<16x32xbf16, #tpu.memory_space<vmem>>, vector<16x32xbf16>
    %c0_21 = arith.constant 0 : index
    %c0_22 = arith.constant 0 : index
    %17 = vector.load %arg8[%c0_21, %c0_22] : memref<32x32xbf16, #tpu.memory_space<vmem>>, vector<32x32xbf16>
    %cst_23 = arith.constant dense<0.000000e+00> : vector<16x32xf32>
    %18 = tpu.matmul %16, %17, %cst_23 {dimension_numbers = #tpu.dot_dimension_numbers<[1], [0], [0], [1], [0, 0, 1, 1], [], []>} : vector<16x32xbf16>, vector<32x32xbf16>, vector<16x32xf32> -> vector<16x32xf32>
    %19 = arith.addf %15, %18 : vector<16x32xf32>
    %c0_24 = arith.constant 0 : index
    %c0_25 = arith.constant 0 : index
    %20 = vector.load %arg14[%c0_24, %c0_25] : memref<16x32xf32, #tpu.memory_space<vmem>>, vector<16x32xf32>
    tpu.vector_store %arg14[%c0_24, %c0_25], %19 {strides = array<i32>} : memref<16x32xf32, #tpu.memory_space<vmem>>, vector<16x32xf32>,
    %c0_i32_26 = arith.constant 0 : i32
    %21 = arith.cmpi eq, %arg2, %c0_i32_26 : i32
    %22 = arith.extui %21 : i1 to i32
    %c0_i32_27 = arith.constant 0 : i32
    %23 = arith.cmpi ne, %22, %c0_i32_27 : i32
    scf.if %23 {
      %c0_28 = arith.constant 0 : index
      %c0_29 = arith.constant 0 : index
      %24 = vector.load %arg12[%c0_28, %c0_29] : memref<16x32xf32, #tpu.memory_space<vmem>>, vector<16x32xf32>
      %25 = arith.truncf %24 : vector<16x32xf32> to vector<16x32xbf16>
      %c0_30 = arith.constant 0 : index
      %c0_31 = arith.constant 0 : index
      %26 = vector.load %arg9[%c0_30, %c0_31] : memref<16x32xbf16, #tpu.memory_space<vmem>>, vector<16x32xbf16>
      tpu.vector_store %arg9[%c0_30, %c0_31], %25 {strides = array<i32>} : memref<16x32xbf16, #tpu.memory_space<vmem>>, vector<16x32xbf16>,
      %c0_32 = arith.constant 0 : index
      %c0_33 = arith.constant 0 : index
      %27 = vector.load %arg13[%c0_32, %c0_33] : memref<16x32xf32, #tpu.memory_space<vmem>>, vector<16x32xf32>
      %28 = arith.truncf %27 : vector<16x32xf32> to vector<16x32xbf16>
      %c0_34 = arith.constant 0 : index
      %c0_35 = arith.constant 0 : index
      %29 = vector.load %arg10[%c0_34, %c0_35] : memref<16x32xbf16, #tpu.memory_space<vmem>>, vector<16x32xbf16>
      tpu.vector_store %arg10[%c0_34, %c0_35], %28 {strides = array<i32>} : memref<16x32xbf16, #tpu.memory_space<vmem>>, vector<16x32xbf16>,
      %c0_36 = arith.constant 0 : index
      %c0_37 = arith.constant 0 : index
      %30 = vector.load %arg14[%c0_36, %c0_37] : memref<16x32xf32, #tpu.memory_space<vmem>>, vector<16x32xf32>
      %31 = arith.truncf %30 : vector<16x32xf32> to vector<16x32xbf16>
      %c0_38 = arith.constant 0 : index
      %c0_39 = arith.constant 0 : index
      %32 = vector.load %arg11[%c0_38, %c0_39] : memref<16x32xbf16, #tpu.memory_space<vmem>>, vector<16x32xbf16>
      tpu.vector_store %arg11[%c0_38, %c0_39], %31 {strides = array<i32>} : memref<16x32xbf16, #tpu.memory_space<vmem>>, vector<16x32xbf16>,
    } else {
    }
    return
  }
  func.func @transform_0(%arg0: i32, %arg1: i32, %arg2: i32) -> (i32, i32) {
    %c0_i32 = arith.constant 0 : i32
    return %arg0, %arg2 : i32, i32
  }
  func.func @transform_1(%arg0: i32, %arg1: i32, %arg2: i32) -> (i32, i32) {
    %c0_i32 = arith.constant 0 : i32
    return %arg0, %arg2 : i32, i32
  }
  func.func @transform_2(%arg0: i32, %arg1: i32, %arg2: i32) -> (i32, i32) {
    %c0_i32 = arith.constant 0 : i32
    return %arg0, %arg2 : i32, i32
  }
  func.func @transform_3(%arg0: i32, %arg1: i32, %arg2: i32) -> (i32, i32) {
    %c0_i32 = arith.constant 0 : i32
    return %arg2, %arg1 : i32, i32
  }
  func.func @transform_4(%arg0: i32, %arg1: i32, %arg2: i32) -> (i32, i32) {
    %c0_i32 = arith.constant 0 : i32
    return %arg2, %arg1 : i32, i32
  }
  func.func @transform_5(%arg0: i32, %arg1: i32, %arg2: i32) -> (i32, i32) {
    %c0_i32 = arith.constant 0 : i32
    return %arg2, %arg1 : i32, i32
  }
  func.func @transform_6(%arg0: i32, %arg1: i32, %arg2: i32) -> (i32, i32) {
    %c0_i32 = arith.constant 0 : i32
    return %arg0, %arg1 : i32, i32
  }
  func.func @transform_7(%arg0: i32, %arg1: i32, %arg2: i32) -> (i32, i32) {
    %c0_i32 = arith.constant 0 : i32
    return %arg0, %arg1 : i32, i32
  }
  func.func @transform_8(%arg0: i32, %arg1: i32, %arg2: i32) -> (i32, i32) {
    %c0_i32 = arith.constant 0 : i32
    return %arg0, %arg1 : i32, i32
  }
}

</mosaic_0001>

<llo_original>
// kernel: tpu_custom_call.1
$region0: #{tpu_custom_call.1}
  #allocation0 [shape = 'u32[]', space=smem, size = 0x4, offset = 0x4, fixed_abs, tag = 'smem constant byte address 0x4 - core index']
  #allocation1 [shape = 'u32[144,128]{1,0:T(1,128)}', space=vmem, size = 0x12000, scoped, tag = 'internal scratch']
  #allocation2 [shape = 'f32[16,32]{1,0:T(8,128)}', space=vmem, size = 0x2000, scoped, tag = 'scratch operand']
  #allocation3 [shape = 'f32[16,32]{1,0:T(8,128)}', space=vmem, size = 0x2000, scoped, tag = 'scratch operand']
  #allocation4 [shape = 'f32[16,32]{1,0:T(8,128)}', space=vmem, size = 0x2000, scoped, tag = 'scratch operand']
  %s0 = inlined_call_operand.hbm [shape: bf16[16,32], index: 0, kind: input, shape index: {}]
  %s1 = inlined_call_operand.hbm [shape: bf16[16,32], index: 1, kind: input, shape index: {}]
  %s2 = inlined_call_operand.hbm [shape: bf16[16,32], index: 2, kind: input, shape index: {}]
  %s3 = inlined_call_operand.hbm [shape: bf16[32,32], index: 3, kind: input, shape index: {}]
  %s4 = inlined_call_operand.hbm [shape: bf16[32,32], index: 4, kind: input, shape index: {}]
  %s5 = inlined_call_operand.vmem [shape: bf16[32,32], index: 5, kind: input, shape index: {}]
  %s6 = inlined_call_operand.hbm [shape: bf16[16,32], index: 6, kind: output, shape index: {0}]
  %s7 = inlined_call_operand.hbm [shape: bf16[16,32], index: 7, kind: output, shape index: {1}]
  %s8 = inlined_call_operand.hbm [shape: bf16[16,32], index: 8, kind: output, shape index: {2}]
  %9 = xla_tuple %s6, %s7, %s8
  %s10 = sld [smem:[#allocation0]]
  $region78: #{tpu_custom_call.1} parent=0
    _
  %s12 = ssub.s32 1, %s10
  %s13 = scalar_select 0, %s12, %s10
  $region1: #{tpu_custom_call.1} parent=0
    #allocation5 [shape = 'u8[4096]{0}', space=vmem, size = 0x1000, scoped, tag = 'input window, operand 0, single buffered']
    #allocation6 [shape = 's32[1]{0}', space=sflag, size = 0x4, scoped, tag = 'scoped memory for tpu_custom_call.1']
    #allocation7 [shape = 's32[1]{0}', space=sflag, size = 0x4, scoped, tag = 'scoped memory for tpu_custom_call.1']
    #allocation8 [shape = 'u8[4096]{0}', space=vmem, size = 0x1000, scoped, tag = 'input window, operand 1, single buffered']
    #allocation9 [shape = 's32[1]{0}', space=sflag, size = 0x4, scoped, tag = 'scoped memory for tpu_custom_call.1']
    #allocation10 [shape = 'u8[4096]{0}', space=vmem, size = 0x1000, scoped, tag = 'input window, operand 2, single buffered']
    #allocation11 [shape = 'u8[8192]{0}', space=vmem, size = 0x2000, scoped, tag = 'input window, operand 3, single buffered']
    #allocation12 [shape = 's32[1]{0}', space=sflag, size = 0x4, scoped, tag = 'scoped memory for tpu_custom_call.1']
    #allocation13 [shape = 'u8[8192]{0}', space=vmem, size = 0x2000, scoped, tag = 'input window, operand 4, single buffered']
    #allocation14 [shape = 'u8[4096]{0}', space=vmem, size = 0x1000, scoped, tag = 'output window, operand 0, single buffered']
    #allocation15 [shape = 'u8[4096]{0}', space=vmem, size = 0x1000, scoped, tag = 'output window, operand 1, single buffered']
    #allocation16 [shape = 's32[1]{0}', space=sflag, size = 0x4, scoped, tag = 'scoped memory for tpu_custom_call.1']
    #allocation17 [shape = 'u8[4096]{0}', space=vmem, size = 0x1000, scoped, tag = 'output window, operand 2, single buffered']
    %14 = vsyncpa [#allocation6], 0
    %15 = vsyncpa [#allocation9], 0
    %16 = vsyncpa [#allocation12], 0
    %17 = vsyncpa [#allocation7], 0
    %18 = vsyncpa [#allocation16], 0
    // Predicated region
    $region2: #{tpu_custom_call.1} parent=1 // pred_check
      _
    $region3: #{tpu_custom_call.1} parent=1 // pred_check_branch
      %20 = sbr.rel (0) target = $region5
    $region4: #{tpu_custom_call.1} parent=1 // pred_region
      %s22 = ssub.s32 128, 128
      %23 = vsyncadd [#allocation6], %s22
      %s24 = sshll.u32 [#allocation5], 4
      %s25 = int_to_ptr.vmem [resolvable:$true] %s24
      %30 = dma.hbm_to_vmem [thread:$0]  %s0, 128, %s25, [#allocation6], 64, 64, 4
    $region5: #{tpu_custom_call.1} parent=1 // pred_fallthru
      _
    // Predicated region
    $region6: #{tpu_custom_call.1} parent=1 // pred_check
      _
    $region7: #{tpu_custom_call.1} parent=1 // pred_check_branch
      %32 = sbr.rel (0) target = $region9
    $region8: #{tpu_custom_call.1} parent=1 // pred_region
      %s34 = ssub.s32 128, 128
      %35 = vsyncadd [#allocation9], %s34
      %s36 = sshll.u32 [#allocation8], 4
      %s37 = int_to_ptr.vmem [resolvable:$true] %s36
      %42 = dma.hbm_to_vmem [thread:$0]  %s1, 128, %s37, [#allocation9], 64, 64, 4
    $region9: #{tpu_custom_call.1} parent=1 // pred_fallthru
      _
    // Predicated region
    $region10: #{tpu_custom_call.1} parent=1 // pred_check
      _
    $region11: #{tpu_custom_call.1} parent=1 // pred_check_branch
      %44 = sbr.rel (0) target = $region13
    $region12: #{tpu_custom_call.1} parent=1 // pred_region
      %s46 = ssub.s32 128, 128
      %47 = vsyncadd [#allocation9], %s46
      %s48 = sshll.u32 [#allocation10], 4
      %s49 = int_to_ptr.vmem [resolvable:$true] %s48
      %54 = dma.hbm_to_vmem [thread:$0]  %s2, 128, %s49, [#allocation9], 64, 64, 4
    $region13: #{tpu_custom_call.1} parent=1 // pred_fallthru
      _
    // Predicated region
    $region14: #{tpu_custom_call.1} parent=1 // pred_check
      _
    $region15: #{tpu_custom_call.1} parent=1 // pred_check_branch
      %56 = sbr.rel (0) target = $region17
    $region16: #{tpu_custom_call.1} parent=1 // pred_region
      %s58 = ssub.s32 256, 256
      %59 = vsyncadd [#allocation12], %s58
      %s60 = sshll.u32 [#allocation11], 4
      %s61 = int_to_ptr.vmem [resolvable:$true] %s60
      %66 = dma.hbm_to_vmem [thread:$0]  %s3, 256, %s61, [#allocation12], 64, 64, 4
    $region17: #{tpu_custom_call.1} parent=1 // pred_fallthru
      _
    // Predicated region
    $region18: #{tpu_custom_call.1} parent=1 // pred_check
      _
    $region19: #{tpu_custom_call.1} parent=1 // pred_check_branch
      %68 = sbr.rel (0) target = $region21
    $region20: #{tpu_custom_call.1} parent=1 // pred_region
      %s70 = ssub.s32 256, 256
      %71 = vsyncadd [#allocation12], %s70
      %s72 = sshll.u32 [#allocation13], 4
      %s73 = int_to_ptr.vmem [resolvable:$true] %s72
      %78 = dma.hbm_to_vmem [thread:$0]  %s4, 256, %s73, [#allocation12], 64, 64, 4
    $region21: #{tpu_custom_call.1} parent=1 // pred_fallthru
      _
    // Predicated region
    $region22: #{tpu_custom_call.1} parent=1 // pred_check
      _
    $region23: #{tpu_custom_call.1} parent=1 // pred_check_branch
      %80 = sbr.rel (0) target = $region25
    $region24: #{tpu_custom_call.1} parent=1 // pred_region
      _
    $region25: #{tpu_custom_call.1} parent=1 // pred_fallthru
      _
    // Predicated region
    $region26: #{tpu_custom_call.1} parent=1 // pred_check
      _
    $region27: #{tpu_custom_call.1} parent=1 // pred_check_branch
      %82 = sbr.rel (0) target = $region29
    $region28: #{tpu_custom_call.1} parent=1 // pred_region
      %83 = dma.done [#allocation6], 128
    $region29: #{tpu_custom_call.1} parent=1 // pred_fallthru
      _
    // Predicated region
    $region30: #{tpu_custom_call.1} parent=1 // pred_check
      _
    $region31: #{tpu_custom_call.1} parent=1 // pred_check_branch
      %85 = sbr.rel (0) target = $region33
    $region32: #{tpu_custom_call.1} parent=1 // pred_region
      %86 = dma.done [#allocation9], 128
    $region33: #{tpu_custom_call.1} parent=1 // pred_fallthru
      _
    // Predicated region
    $region34: #{tpu_custom_call.1} parent=1 // pred_check
      _
    $region35: #{tpu_custom_call.1} parent=1 // pred_check_branch
      %88 = sbr.rel (0) target = $region37
    $region36: #{tpu_custom_call.1} parent=1 // pred_region
      %89 = dma.done [#allocation9], 128
    $region37: #{tpu_custom_call.1} parent=1 // pred_fallthru
      _
    // Predicated region
    $region38: #{tpu_custom_call.1} parent=1 // pred_check
      _
    $region39: #{tpu_custom_call.1} parent=1 // pred_check_branch
      %91 = sbr.rel (0) target = $region41
    $region40: #{tpu_custom_call.1} parent=1 // pred_region
      %92 = dma.done [#allocation12], 256
    $region41: #{tpu_custom_call.1} parent=1 // pred_fallthru
      _
    // Predicated region
    $region42: #{tpu_custom_call.1} parent=1 // pred_check
      _
    $region43: #{tpu_custom_call.1} parent=1 // pred_check_branch
      %94 = sbr.rel (0) target = $region45
    $region44: #{tpu_custom_call.1} parent=1 // pred_region
      %95 = dma.done [#allocation12], 256
    $region45: #{tpu_custom_call.1} parent=1 // pred_fallthru
      _
    %p97 = scmp.eq.s32.totalorder 0, 0
    // Predicated region
    $region46: #{tpu_custom_call.1} parent=1 // pred_check
      %p98 = pneg %p97
    $region47: #{tpu_custom_call.1} parent=1 // pred_check_branch
      %100 = sbr.rel (%p98) target = $region49
    $region48: #{tpu_custom_call.1} parent=1 // pred_region
      %vm101 = vcmask 261120
      %102 = vst.msk [vmem:[#allocation2] sm:$0xff] %vm101, 0.0
      %103 = vst.msk [vmem:[#allocation2 + $0x8] sm:$0xff] %vm101, 0.0
      %104 = vst.msk [vmem:[#allocation3] sm:$0xff] %vm101, 0.0
      %105 = vst.msk [vmem:[#allocation3 + $0x8] sm:$0xff] %vm101, 0.0
      %106 = vst.msk [vmem:[#allocation4] sm:$0xff] %vm101, 0.0
      %107 = vst.msk [vmem:[#allocation4 + $0x8] sm:$0xff] %vm101, 0.0
    $region49: #{tpu_custom_call.1} parent=1 // pred_fallthru
      _
    %v108 = vld [vmem:[#allocation2] sm:$0xff]
    %v109 = vld [vmem:[#allocation2 + $0x8] sm:$0xff]
    %v110 = vld [vmem:[#allocation5] sm:$0xf]
    %v111 = vld [vmem:[#allocation5 + $0x4] sm:$0xf]
    %v112 = vld [vmem:[#allocation11] sm:$0xf]
    %v113 = vld [vmem:[#allocation11 + $0x4] sm:$0xf]
    %v114 = vld [vmem:[#allocation11 + $0x8] sm:$0xf]
    %v115 = vld [vmem:[#allocation11 + $0xc] sm:$0xf]
    %v118 = vunpack.c.l.b16 %v110
    %v119 = vunpack.c.l.b16 %v111
    %v120 = vpack.c.b16 %v119, %v118
    %v125 = vunpack.c.l.b16 %v112
    %v126 = vunpack.c.l.b16 %v113
    %v127 = vunpack.c.l.b16 %v114
    %v128 = vunpack.c.l.b16 %v115
    %v129 = vpack.c.b16 %v126, %v125
    %v130 = vpack.c.b16 %v128, %v127
    %vm133 = vcmask 261120
    %v135 = vsel %vm133, %v120, 0
    %137 = vmatprep.subr.bf16.mxu0 0
    %138 = vmatpush1.bf16.msra.mxu0 %v129
    %139 = vmatprep.subr.bf16.mxu0 0
    %140 = vmatpush1.bf16.msra.mxu0 %v130
    %141 = vmatprep.subr.bf16.mxu0 0
    %142 = vmatpush1.bf16.msra.mxu0 0
    %143 = vmatprep.subr.bf16.mxu0 0
    %144 = vmatpush1.bf16.msra.mxu0 0
    %145 = vmatprep.subr.bf16.mxu0 0
    %146 = vmatpush1.bf16.msra.mxu0 0
    %147 = vmatprep.subr.bf16.mxu0 0
    %148 = vmatpush1.bf16.msra.mxu0 0
    %149 = vmatprep.subr.bf16.mxu0 0
    %150 = vmatpush1.bf16.msra.mxu0 0
    %151 = vmatprep.subr.bf16.mxu0 0
    %152 = vmatpush1.bf16.msra.mxu0 0
    %153 = vmatprep.subr.bf16.mxu0 0
    %154 = vmatpush1.bf16.msra.mxu0 0
    %155 = vmatprep.subr.bf16.mxu0 0
    %156 = vmatpush1.bf16.msra.mxu0 0
    %157 = vmatprep.subr.bf16.mxu0 0
    %158 = vmatpush1.bf16.msra.mxu0 0
    %159 = vmatprep.subr.bf16.mxu0 0
    %160 = vmatpush1.bf16.msra.mxu0 0
    %161 = vmatprep.subr.bf16.mxu0 0
    %162 = vmatpush1.bf16.msra.mxu0 0
    %163 = vmatprep.subr.bf16.mxu0 0
    %164 = vmatpush1.bf16.msra.mxu0 0
    %165 = vmatprep.subr.bf16.mxu0 0
    %166 = vmatpush1.bf16.msra.mxu0 0
    %167 = vmatprep.subr.bf16.mxu0 0
    %168 = vmatpush1.bf16.msra.mxu0 0
    %169 = vmatprep.mubr.bf16.mxu0 0
    %170 = vmatmul.mubr.bf16.gmra.mrb[0].mxu0 %v135
    %v171 = vpop.f32.mrb[0].mxu0
    %v172 = vadd.f32 0.0, %v171
    %v173 = vpop.f32.mrb[0].mxu0
    %v174 = vpop.f32.mrb[0].mxu0
    %v175 = vadd.f32 0.0, %v174
    %v176 = vpop.f32.mrb[0].mxu0
    %177 = vdwg.mxu0
    %v178 = vadd.f32 %v108, %v172
    %v179 = vadd.f32 %v109, %v175
    %180 = vst.msk [vmem:[#allocation2] sm:$0xff] %vm133, %v178
    %181 = vst.msk [vmem:[#allocation2 + $0x8] sm:$0xff] %vm133, %v179
    %v182 = vld [vmem:[#allocation3] sm:$0xff]
    %v183 = vld [vmem:[#allocation3 + $0x8] sm:$0xff]
    %v184 = vld [vmem:[#allocation8] sm:$0xf]
    %v185 = vld [vmem:[#allocation8 + $0x4] sm:$0xf]
    %v186 = vld [vmem:[#allocation13] sm:$0xf]
    %v187 = vld [vmem:[#allocation13 + $0x4] sm:$0xf]
    %v188 = vld [vmem:[#allocation13 + $0x8] sm:$0xf]
    %v189 = vld [vmem:[#allocation13 + $0xc] sm:$0xf]
    %v192 = vunpack.c.l.b16 %v184
    %v193 = vunpack.c.l.b16 %v185
    %v194 = vpack.c.b16 %v193, %v192
    %v199 = vunpack.c.l.b16 %v186
    %v200 = vunpack.c.l.b16 %v187
    %v201 = vunpack.c.l.b16 %v188
    %v202 = vunpack.c.l.b16 %v189
    %v203 = vpack.c.b16 %v200, %v199
    %v204 = vpack.c.b16 %v202, %v201
    %v208 = vsel %vm133, %v194, 0
    %210 = vmatprep.subr.bf16.mxu0 0
    %211 = vmatpush1.bf16.msra.mxu0 %v203
    %212 = vmatprep.subr.bf16.mxu0 0
    %213 = vmatpush1.bf16.msra.mxu0 %v204
    %214 = vmatprep.subr.bf16.mxu0 0
    %215 = vmatpush1.bf16.msra.mxu0 0
    %216 = vmatprep.subr.bf16.mxu0 0
    %217 = vmatpush1.bf16.msra.mxu0 0
    %218 = vmatprep.subr.bf16.mxu0 0
    %219 = vmatpush1.bf16.msra.mxu0 0
    %220 = vmatprep.subr.bf16.mxu0 0
    %221 = vmatpush1.bf16.msra.mxu0 0
    %222 = vmatprep.subr.bf16.mxu0 0
    %223 = vmatpush1.bf16.msra.mxu0 0
    %224 = vmatprep.subr.bf16.mxu0 0
    %225 = vmatpush1.bf16.msra.mxu0 0
    %226 = vmatprep.subr.bf16.mxu0 0
    %227 = vmatpush1.bf16.msra.mxu0 0
    %228 = vmatprep.subr.bf16.mxu0 0
    %229 = vmatpush1.bf16.msra.mxu0 0
    %230 = vmatprep.subr.bf16.mxu0 0
    %231 = vmatpush1.bf16.msra.mxu0 0
    %232 = vmatprep.subr.bf16.mxu0 0
    %233 = vmatpush1.bf16.msra.mxu0 0
    %234 = vmatprep.subr.bf16.mxu0 0
    %235 = vmatpush1.bf16.msra.mxu0 0
    %236 = vmatprep.subr.bf16.mxu0 0
    %237 = vmatpush1.bf16.msra.mxu0 0
    %238 = vmatprep.subr.bf16.mxu0 0
    %239 = vmatpush1.bf16.msra.mxu0 0
    %240 = vmatprep.subr.bf16.mxu0 0
    %241 = vmatpush1.bf16.msra.mxu0 0
    %242 = vmatprep.mubr.bf16.mxu0 0
    %243 = vmatmul.mubr.bf16.gmra.mrb[0].mxu0 %v208
    %v244 = vpop.f32.mrb[0].mxu0
    %v245 = vadd.f32 0.0, %v244
    %v246 = vpop.f32.mrb[0].mxu0
    %v247 = vpop.f32.mrb[0].mxu0
    %v248 = vadd.f32 0.0, %v247
    %v249 = vpop.f32.mrb[0].mxu0
    %250 = vdwg.mxu0
    %v251 = vadd.f32 %v182, %v245
    %v252 = vadd.f32 %v183, %v248
    %253 = vst.msk [vmem:[#allocation3] sm:$0xff] %vm133, %v251
    %254 = vst.msk [vmem:[#allocation3 + $0x8] sm:$0xff] %vm133, %v252
    %v255 = vld [vmem:[#allocation4] sm:$0xff]
    %v256 = vld [vmem:[#allocation4 + $0x8] sm:$0xff]
    %v257 = vld [vmem:[#allocation10] sm:$0xf]
    %v258 = vld [vmem:[#allocation10 + $0x4] sm:$0xf]
    %v259 = vld [vmem:[%s5] sm:$0xf]
    %v260 = vld [vmem:[%s5 + $0x4] sm:$0xf]
    %v261 = vld [vmem:[%s5 + $0x8] sm:$0xf]
    %v262 = vld [vmem:[%s5 + $0xc] sm:$0xf]
    %v265 = vunpack.c.l.b16 %v257
    %v266 = vunpack.c.l.b16 %v258
    %v267 = vpack.c.b16 %v266, %v265
    %v272 = vunpack.c.l.b16 %v259
    %v273 = vunpack.c.l.b16 %v260
    %v274 = vunpack.c.l.b16 %v261
    %v275 = vunpack.c.l.b16 %v262
    %v276 = vpack.c.b16 %v273, %v272
    %v277 = vpack.c.b16 %v275, %v274
    %v281 = vsel %vm133, %v267, 0
    %283 = vmatprep.subr.bf16.mxu0 0
    %284 = vmatpush1.bf16.msra.mxu0 %v276
    %285 = vmatprep.subr.bf16.mxu0 0
    %286 = vmatpush1.bf16.msra.mxu0 %v277
    %287 = vmatprep.subr.bf16.mxu0 0
    %288 = vmatpush1.bf16.msra.mxu0 0
    %289 = vmatprep.subr.bf16.mxu0 0
    %290 = vmatpush1.bf16.msra.mxu0 0
    %291 = vmatprep.subr.bf16.mxu0 0
    %292 = vmatpush1.bf16.msra.mxu0 0
    %293 = vmatprep.subr.bf16.mxu0 0
    %294 = vmatpush1.bf16.msra.mxu0 0
    %295 = vmatprep.subr.bf16.mxu0 0
    %296 = vmatpush1.bf16.msra.mxu0 0
    %297 = vmatprep.subr.bf16.mxu0 0
    %298 = vmatpush1.bf16.msra.mxu0 0
    %299 = vmatprep.subr.bf16.mxu0 0
    %300 = vmatpush1.bf16.msra.mxu0 0
    %301 = vmatprep.subr.bf16.mxu0 0
    %302 = vmatpush1.bf16.msra.mxu0 0
    %303 = vmatprep.subr.bf16.mxu0 0
    %304 = vmatpush1.bf16.msra.mxu0 0
    %305 = vmatprep.subr.bf16.mxu0 0
    %306 = vmatpush1.bf16.msra.mxu0 0
    %307 = vmatprep.subr.bf16.mxu0 0
    %308 = vmatpush1.bf16.msra.mxu0 0
    %309 = vmatprep.subr.bf16.mxu0 0
    %310 = vmatpush1.bf16.msra.mxu0 0
    %311 = vmatprep.subr.bf16.mxu0 0
    %312 = vmatpush1.bf16.msra.mxu0 0
    %313 = vmatprep.subr.bf16.mxu0 0
    %314 = vmatpush1.bf16.msra.mxu0 0
    %315 = vmatprep.mubr.bf16.mxu0 0
    %316 = vmatmul.mubr.bf16.gmra.mrb[0].mxu0 %v281
    %v317 = vpop.f32.mrb[0].mxu0
    %v318 = vadd.f32 0.0, %v317
    %v319 = vpop.f32.mrb[0].mxu0
    %v320 = vpop.f32.mrb[0].mxu0
    %v321 = vadd.f32 0.0, %v320
    %v322 = vpop.f32.mrb[0].mxu0
    %323 = vdwg.mxu0
    %v324 = vadd.f32 %v255, %v318
    %v325 = vadd.f32 %v256, %v321
    %326 = vst.msk [vmem:[#allocation4] sm:$0xff] %vm133, %v324
    %327 = vst.msk [vmem:[#allocation4 + $0x8] sm:$0xff] %vm133, %v325
    // Predicated region
    $region50: #{tpu_custom_call.1} parent=1 // pred_check
      %p328 = pneg %p97
    $region51: #{tpu_custom_call.1} parent=1 // pred_check_branch
      %330 = sbr.rel (%p328) target = $region53
    $region52: #{tpu_custom_call.1} parent=1 // pred_region
      %v331 = vld [vmem:[#allocation2] sm:$0xff]
      %v332 = vld [vmem:[#allocation2 + $0x8] sm:$0xff]
      %v333 = vpack.c.bf16 %v332, %v331
      %v335 = vunpack.c.l.b16 %v333
      %v336 = vunpack.c.h.b16 %v333
      %v337 = vpack.c.b16 %v335, %v335
      %v338 = vpack.c.b16 %v336, %v336
      %vm341 = vcmask 257024
      %342 = vst.msk [vmem:[#allocation14] sm:$0xf] %vm341, %v337
      %343 = vst.msk [vmem:[#allocation14 + $0x4] sm:$0xf] %vm341, %v338
      %v344 = vld [vmem:[#allocation3] sm:$0xff]
      %v345 = vld [vmem:[#allocation3 + $0x8] sm:$0xff]
      %v346 = vpack.c.bf16 %v345, %v344
      %v348 = vunpack.c.l.b16 %v346
      %v349 = vunpack.c.h.b16 %v346
      %v350 = vpack.c.b16 %v348, %v348
      %v351 = vpack.c.b16 %v349, %v349
      %354 = vst.msk [vmem:[#allocation15] sm:$0xf] %vm341, %v350
      %355 = vst.msk [vmem:[#allocation15 + $0x4] sm:$0xf] %vm341, %v351
      %v356 = vld [vmem:[#allocation4] sm:$0xff]
      %v357 = vld [vmem:[#allocation4 + $0x8] sm:$0xff]
      %v358 = vpack.c.bf16 %v357, %v356
      %v360 = vunpack.c.l.b16 %v358
      %v361 = vunpack.c.h.b16 %v358
      %v362 = vpack.c.b16 %v360, %v360
      %v363 = vpack.c.b16 %v361, %v361
      %366 = vst.msk [vmem:[#allocation17] sm:$0xf] %vm341, %v362
      %367 = vst.msk [vmem:[#allocation17 + $0x4] sm:$0xf] %vm341, %v363
    $region53: #{tpu_custom_call.1} parent=1 // pred_fallthru
      _
    // Predicated region
    $region54: #{tpu_custom_call.1} parent=1 // pred_check
      _
    $region55: #{tpu_custom_call.1} parent=1 // pred_check_branch
      %369 = sbr.rel (0) target = $region57
    $region56: #{tpu_custom_call.1} parent=1 // pred_region
      %s371 = ssub.s32 128, 128
      %372 = vsyncadd [#allocation7], %s371
      %s373 = sshll.u32 [#allocation14], 4
      %s374 = int_to_ptr.vmem [resolvable:$true] %s373
      %379 = dma.vmem_to_hbm [thread:$0]  %s374, 128, %s6, [#allocation7], 64, 64, 4
    $region57: #{tpu_custom_call.1} parent=1 // pred_fallthru
      _
    // Predicated region
    $region58: #{tpu_custom_call.1} parent=1 // pred_check
      _
    $region59: #{tpu_custom_call.1} parent=1 // pred_check_branch
      %381 = sbr.rel (0) target = $region61
    $region60: #{tpu_custom_call.1} parent=1 // pred_region
      %s383 = ssub.s32 128, 128
      %384 = vsyncadd [#allocation16], %s383
      %s385 = sshll.u32 [#allocation15], 4
      %s386 = int_to_ptr.vmem [resolvable:$true] %s385
      %391 = dma.vmem_to_hbm [thread:$0]  %s386, 128, %s7, [#allocation16], 64, 64, 4
    $region61: #{tpu_custom_call.1} parent=1 // pred_fallthru
      _
    // Predicated region
    $region62: #{tpu_custom_call.1} parent=1 // pred_check
      _
    $region63: #{tpu_custom_call.1} parent=1 // pred_check_branch
      %393 = sbr.rel (0) target = $region65
    $region64: #{tpu_custom_call.1} parent=1 // pred_region
      %s395 = ssub.s32 128, 128
      %396 = vsyncadd [#allocation16], %s395
      %s397 = sshll.u32 [#allocation17], 4
      %s398 = int_to_ptr.vmem [resolvable:$true] %s397
      %403 = dma.vmem_to_hbm [thread:$0]  %s398, 128, %s8, [#allocation16], 64, 64, 4
    $region65: #{tpu_custom_call.1} parent=1 // pred_fallthru
      _
    // Predicated region
    $region66: #{tpu_custom_call.1} parent=1 // pred_check
      _
    $region67: #{tpu_custom_call.1} parent=1 // pred_check_branch
      %405 = sbr.rel (0) target = $region69
    $region68: #{tpu_custom_call.1} parent=1 // pred_region
      %406 = dma.done [#allocation7], 128
    $region69: #{tpu_custom_call.1} parent=1 // pred_fallthru
      _
    // Predicated region
    $region70: #{tpu_custom_call.1} parent=1 // pred_check
      _
    $region71: #{tpu_custom_call.1} parent=1 // pred_check_branch
      %408 = sbr.rel (0) target = $region73
    $region72: #{tpu_custom_call.1} parent=1 // pred_region
      %409 = dma.done [#allocation16], 128
    $region73: #{tpu_custom_call.1} parent=1 // pred_fallthru
      _
    // Predicated region
    $region74: #{tpu_custom_call.1} parent=1 // pred_check
      _
    $region75: #{tpu_custom_call.1} parent=1 // pred_check_branch
      %411 = sbr.rel (0) target = $region77
    $region76: #{tpu_custom_call.1} parent=1 // pred_region
      %412 = dma.done [#allocation16], 128
    $region77: #{tpu_custom_call.1} parent=1 // pred_fallthru
      _
    %413 = vsyncpa [#allocation6], 1
    %414 = vsyncpa [#allocation9], 1
    %415 = vsyncpa [#allocation12], 1
    %416 = vsyncpa [#allocation7], 1
    %417 = vsyncpa [#allocation16], 1

</llo_original>
